<compile_context>
chip_gen: v7x
topology: tpu7x:2x2x1
jax: 0.10.0
libtpu: 0.0.40
codegen_flags: <defaults>
</compile_context>

<pallas_src>
import jax
import jax.numpy as jnp
from jax.experimental import pallas as pl
from jax.experimental.pallas import tpu as pltpu


# ---------------------------------------------------------------------------
# Kernels
# ---------------------------------------------------------------------------

def _gate_kernel_resident(x1_ref, x2_ref, w1_ref, w2_ref, b_ref, o_ref):
    """Both (H, H) weights VMEM-resident; 1-D grid over row tiles."""
    z = (
        jnp.dot(x1_ref[...], w1_ref[...], preferred_element_type=jnp.float32)
        + jnp.dot(x2_ref[...], w2_ref[...], preferred_element_type=jnp.float32)
        + b_ref[...].astype(jnp.float32)
    )
    # sigmoid(z) == 0.5 * (tanh(0.5*z) + 1): keeps the transcendental on the
    # EUP slot instead of exp + VALU divide (relevant on v5e).
    gate = 0.5 * (jnp.tanh(0.5 * z) + 1.0)
    o_ref[...] = (gate * x2_ref[...].astype(jnp.float32)).astype(o_ref.dtype)


def _gate_kernel_ktiled(x1_ref, x2k_ref, w1_ref, w2_ref, b_ref, x2_ref,
                        o_ref, acc_ref):
    """Large-H regime: contraction tiled over grid axis 1, f32 accumulator."""
    k = pl.program_id(1)

    @pl.when(k == 0)
    def _():
        acc_ref[...] = jnp.zeros_like(acc_ref)

    acc_ref[...] += (
        jnp.dot(x1_ref[...], w1_ref[...], preferred_element_type=jnp.float32)
        + jnp.dot(x2k_ref[...], w2_ref[...], preferred_element_type=jnp.float32)
    )

    @pl.when(k == pl.num_programs(1) - 1)
    def _():
        z = acc_ref[...] + b_ref[...].astype(jnp.float32)
        gate = 0.5 * (jnp.tanh(0.5 * z) + 1.0)
        o_ref[...] = (gate * x2_ref[...].astype(jnp.float32)).astype(o_ref.dtype)


# ---------------------------------------------------------------------------
# Tile / VMEM planning
# ---------------------------------------------------------------------------

def _round_up(x, m):
    return ((x + m - 1) // m) * m


def _vmem_capacity_bytes():
    try:
        return int(pltpu.get_tpu_info().vmem_capacity_bytes)
    except Exception:
        return 128 << 20  # conservative fallback (v5e/v6e)


def _clamp_tm(tm, n_rows, sub):
    """Round TM to the dtype sublane multiple, clamp, and guarantee >=2 steps."""
    tm = max((int(tm) // sub) * sub, sub)
    tm = min(tm, 1024)
    # >= 2 row tiles so v7x's two TensorCores both get work; prefer >= 8 tiles
    # when that does not shrink tiles below ~512 rows (DMA-efficiency plateau).
    cap2 = _round_up(-(-n_rows // 2), sub)
    cap8 = _round_up(-(-n_rows // 8), sub)
    tm = min(tm, max(cap8, min(512, cap2)))
    return max(tm, sub)


def _plan_tiles(n_rows, h, x_isz, w_isz, o_isz, budget, sub):
    """Return (tm, tk). tk=None => weights fully VMEM-resident (no K axis)."""
    f32 = 4
    usable = budget - (2 << 20)  # headroom for Mosaic internal scratch

    # Path A: both (H, H) weights resident.  Conservatively count 2 pipeline
    # buffers even for constant-index blocks, plus (TM, H) f32 z/gate temps.
    resident_a = 2 * 2 * h * h * w_isz + 2 * h * f32
    per_row_a = 2 * h * (2 * x_isz + o_isz) + 2 * h * f32
    if usable - resident_a >= sub * per_row_a:
        return _clamp_tm((usable - resident_a) // per_row_a, n_rows, sub), None

    # Path B: tile the contraction axis (reduction grid axis, f32 accumulator)
    # instead of over-requesting VMEM.
    for tk in (512, 256, 128):
        if h % tk:
            continue
        resident_b = 2 * 2 * tk * h * w_isz + 2 * h * f32
        per_row_b = (2 * 2 * tk * x_isz            # x1_k, x2_k (double-buffered)
                     + 2 * h * (x_isz + o_isz)     # x2 full row, out (double-buffered)
                     + h * f32                     # f32 accumulator scratch
                     + 2 * h * f32)                # z / gate temporaries
        if usable - resident_b >= sub * per_row_b:
            return _clamp_tm((usable - resident_b) // per_row_b, n_rows, sub), tk

    # TODO(synk): huge H that is not a multiple of 128 (or does not fit even at
    # tk=128) — fall back to minimal row tiles on the resident layout.
    return sub, None


# ---------------------------------------------------------------------------
# Wrapper
# ---------------------------------------------------------------------------

def gate_network(x1, x2, w1_t, b1, w2_t, b2, *, compute_dtype=None,
                 out_dtype=None):
    """sigmoid(x1 @ w1_t + b1 + x2 @ w2_t + b2) * x2.

    x1, x2: (..., H); w*_t: (H, H) already transposed; b*: (H,) or (1, H).
    compute_dtype=jnp.bfloat16 halves HBM traffic / resident VMEM (f32 accum).
    """
    assert x1.shape == x2.shape
    *lead, H = x1.shape
    N = 1
    for d in lead:
        N *= d
    N = max(int(N), 1)
    x1 = x1.reshape(N, H)
    x2 = x2.reshape(N, H)
    out_dtype = jnp.dtype(out_dtype or x2.dtype)

    # Fuse the two biases outside the kernel (one fewer operand + VPU add);
    # keep them f32 so they add straight onto the f32 accumulator.
    b = (jnp.reshape(b1, (1, H)) + jnp.reshape(b2, (1, H))).astype(jnp.float32)

    if compute_dtype is not None:
        cdt = jnp.dtype(compute_dtype)
        # Under jit these casts fuse into the producers (no extra HBM pass);
        # ideally the caller hands us bf16 operands directly.
        x1 = x1.astype(cdt)
        x2 = x2.astype(cdt)
        w1_t = w1_t.astype(cdt)
        w2_t = w2_t.astype(cdt)

    x_isz = jnp.dtype(x1.dtype).itemsize
    w_isz = jnp.dtype(w1_t.dtype).itemsize
    o_isz = out_dtype.itemsize
    sub = max(8, 32 // x_isz)  # sublane multiple: 8 for f32, 16 for bf16

    budget = (_vmem_capacity_bytes() * 3) // 4   # ~96 MiB (128 MiB parts), ~48 MiB (v7x)
    tm, tk = _plan_tiles(N, H, x_isz, w_isz, o_isz, budget, sub)

    cost = pl.CostEstimate(
        flops=4 * N * H * H,
        transcendentals=N * H,
        bytes_accessed=N * H * (2 * x_isz + o_isz) + 2 * H * H * w_isz,
    )

    n_row_tiles = pl.cdiv(N, tm)   # ragged last row block is clipped by Pallas

    if tk is None:
        # Weights fully resident: 1-D row grid, auto double-buffered x1/x2/out.
        row_spec = pl.BlockSpec((tm, H), lambda i: (i, 0))
        w_spec = pl.BlockSpec((H, H), lambda i: (0, 0))     # constant index -> resident
        b_spec = pl.BlockSpec((1, H), lambda i: (0, 0))
        out = pl.pallas_call(
            _gate_kernel_resident,
            out_shape=jax.ShapeDtypeStruct((N, H), out_dtype),
            grid=(n_row_tiles,),
            in_specs=[row_spec, row_spec, w_spec, w_spec, b_spec],
            out_specs=row_spec,
            compiler_params=pltpu.CompilerParams(
                dimension_semantics=("parallel",),   # rows shard across v7x TCs
                vmem_limit_bytes=int(budget),
            ),
            cost_estimate=cost,
        )(x1, x2, w1_t, w2_t, b)
    else:
        # Large-H: 2-D grid (rows parallel, K arbitrary) with f32 accumulator.
        # x2 is passed twice: K-sliced for the matmul, full row for the
        # epilogue (weight traffic dominates in this regime).
        nk = H // tk
        xk_spec = pl.BlockSpec((tm, tk), lambda i, k: (i, k))
        w_spec = pl.BlockSpec((tk, H), lambda i, k: (k, 0))
        b_spec = pl.BlockSpec((1, H), lambda i, k: (0, 0))
        row_spec = pl.BlockSpec((tm, H), lambda i, k: (i, 0))
        out = pl.pallas_call(
            _gate_kernel_ktiled,
            out_shape=jax.ShapeDtypeStruct((N, H), out_dtype),
            grid=(n_row_tiles, nk),
            in_specs=[xk_spec, xk_spec, w_spec, w_spec, b_spec, row_spec],
            out_specs=row_spec,
            scratch_shapes=[pltpu.VMEM((tm, H), jnp.float32)],
            compiler_params=pltpu.CompilerParams(
                dimension_semantics=("parallel", "arbitrary"),
                vmem_limit_bytes=int(budget),
            ),
            cost_estimate=cost,
        )(x1, x2, w1_t, w2_t, b, x2)

    return out.reshape(*lead, H)


def gate_network_ref(x1, x2, w1_t, b1, w2_t, b2):
    z = x1 @ w1_t + b1 + x2 @ w2_t + b2
    return jax.nn.sigmoid(z) * x2


# ---------------------------------------------------------------------------
# Self-test
# ---------------------------------------------------------------------------

if __name__ == "__main__":
    # Small shapes consistent with the module: batch=2, seq=8, hidden=32.
    batch, seq, hidden = 2, 8, 32
    key = jax.random.PRNGKey(0)
    k1, k2, k3, k4, k5, k6 = jax.random.split(key, 6)

    # Deterministic nn.Linear-like init.
    bound = 1.0 / (hidden ** 0.5)
    w1 = jax.random.uniform(k1, (hidden, hidden), jnp.float32, -bound, bound)
    b1 = jax.random.uniform(k2, (hidden,), jnp.float32, -bound, bound)
    w2 = jax.random.uniform(k3, (hidden, hidden), jnp.float32, -bound, bound)
    b2 = jax.random.uniform(k4, (hidden,), jnp.float32, -bound, bound)
    w1_t, w2_t = w1.T, w2.T        # kernel does x @ W (== PyTorch x @ W.T)

    input1 = jax.random.normal(k5, (batch, seq, hidden), jnp.float32)
    input2 = jax.random.normal(k6, (batch, seq, hidden), jnp.float32)

    ref = gate_network_ref(input1, input2, w1_t, b1, w2_t, b2)

    # f32 path: faithful to the PyTorch module.
    out = jax.block_until_ready(gate_network(input1, input2, w1_t, b1, w2_t, b2))
    assert out.shape == input2.shape
    assert jnp.allclose(out, ref, atol=1e-5, rtol=1e-5), "f32 mismatch vs reference"

    # bf16-operand path (f32 accumulation, f32 output): the HBM-traffic lever.
    out_bf16 = jax.block_until_ready(
        gate_network(input1, input2, w1_t, b1, w2_t, b2,
                     compute_dtype=jnp.bfloat16))
    assert out_bf16.shape == input2.shape
    assert jnp.allclose(out_bf16, ref, atol=5e-2, rtol=5e-2), "bf16 mismatch vs reference"

    print("KERNEL_OK")
</pallas_src>

<mosaic_0001>
module attributes {stable_mosaic.version = 11 : i64} {
  func.func @_gate_kernel_resident(%arg0: i32, %arg1: memref<8x32xf32, #tpu.memory_space<vmem>>, %arg2: memref<8x32xf32, #tpu.memory_space<vmem>>, %arg3: memref<32x32xf32, #tpu.memory_space<vmem>>, %arg4: memref<32x32xf32, #tpu.memory_space<vmem>>, %arg5: memref<1x32xf32, #tpu.memory_space<vmem>>, %arg6: memref<8x32xf32, #tpu.memory_space<vmem>>) attributes {dimension_semantics = [#tpu.dimension_semantics<parallel>], iteration_bounds = array<i64: 2>, scalar_prefetch = 0 : i64, scratch_operands = 0 : i64, tpu.core_type = #tpu.core_type<tc>, window_params = [{transform_indices = @transform_0, window_bounds = array<i64: 8, 32>}, {transform_indices = @transform_1, window_bounds = array<i64: 8, 32>}, {pipeline_mode = #tpu.pipeline_mode<synchronous>, transform_indices = @transform_2, window_bounds = array<i64: 32, 32>}, {pipeline_mode = #tpu.pipeline_mode<synchronous>, transform_indices = @transform_3, window_bounds = array<i64: 32, 32>}, {pipeline_mode = #tpu.pipeline_mode<synchronous>, transform_indices = @transform_4, window_bounds = array<i64: 1, 32>}, {transform_indices = @transform_5, window_bounds = array<i64: 8, 32>}]} {
    %c0 = arith.constant 0 : index
    %c0_0 = arith.constant 0 : index
    %0 = vector.load %arg1[%c0, %c0_0] : memref<8x32xf32, #tpu.memory_space<vmem>>, vector<8x32xf32>
    %c0_1 = arith.constant 0 : index
    %c0_2 = arith.constant 0 : index
    %1 = vector.load %arg3[%c0_1, %c0_2] : memref<32x32xf32, #tpu.memory_space<vmem>>, vector<32x32xf32>
    %cst = arith.constant dense<0.000000e+00> : vector<8x32xf32>
    %2 = tpu.matmul %0, %1, %cst {dimension_numbers = #tpu.dot_dimension_numbers<[1], [0], [0], [1], [0, 0, 1, 1], [], []>} : vector<8x32xf32>, vector<32x32xf32>, vector<8x32xf32> -> vector<8x32xf32>
    %c0_3 = arith.constant 0 : index
    %c0_4 = arith.constant 0 : index
    %3 = vector.load %arg2[%c0_3, %c0_4] : memref<8x32xf32, #tpu.memory_space<vmem>>, vector<8x32xf32>
    %c0_5 = arith.constant 0 : index
    %c0_6 = arith.constant 0 : index
    %4 = vector.load %arg4[%c0_5, %c0_6] : memref<32x32xf32, #tpu.memory_space<vmem>>, vector<32x32xf32>
    %cst_7 = arith.constant dense<0.000000e+00> : vector<8x32xf32>
    %5 = tpu.matmul %3, %4, %cst_7 {dimension_numbers = #tpu.dot_dimension_numbers<[1], [0], [0], [1], [0, 0, 1, 1], [], []>} : vector<8x32xf32>, vector<32x32xf32>, vector<8x32xf32> -> vector<8x32xf32>
    %6 = arith.addf %2, %5 : vector<8x32xf32>
    %c0_8 = arith.constant 0 : index
    %c0_9 = arith.constant 0 : index
    %7 = vector.load %arg5[%c0_8, %c0_9] : memref<1x32xf32, #tpu.memory_space<vmem>>, vector<1x32xf32>
    %8 = vector.broadcast %7 : vector<1x32xf32> to vector<8x32xf32>
    %9 = arith.addf %6, %8 : vector<8x32xf32>
    %cst_10 = arith.constant 5.000000e-01 : f32
    %10 = vector.broadcast %cst_10 : f32 to vector<8x32xf32>
    %11 = arith.mulf %10, %9 : vector<8x32xf32>
    %12 = math.tanh %11 : vector<8x32xf32>
    %cst_11 = arith.constant 1.000000e+00 : f32
    %13 = vector.broadcast %cst_11 : f32 to vector<8x32xf32>
    %14 = arith.addf %12, %13 : vector<8x32xf32>
    %cst_12 = arith.constant 5.000000e-01 : f32
    %15 = vector.broadcast %cst_12 : f32 to vector<8x32xf32>
    %16 = arith.mulf %15, %14 : vector<8x32xf32>
    %c0_13 = arith.constant 0 : index
    %c0_14 = arith.constant 0 : index
    %17 = vector.load %arg2[%c0_13, %c0_14] : memref<8x32xf32, #tpu.memory_space<vmem>>, vector<8x32xf32>
    %18 = arith.mulf %16, %17 : vector<8x32xf32>
    %c0_15 = arith.constant 0 : index
    %c0_16 = arith.constant 0 : index
    %19 = vector.load %arg6[%c0_15, %c0_16] : memref<8x32xf32, #tpu.memory_space<vmem>>, vector<8x32xf32>
    tpu.vector_store %arg6[%c0_15, %c0_16], %18 {strides = array<i32>} : memref<8x32xf32, #tpu.memory_space<vmem>>, vector<8x32xf32>,
    return
  }
  func.func @transform_0(%arg0: i32) -> (i32, i32) {
    %c0_i32 = arith.constant 0 : i32
    %c0_i32_0 = arith.constant 0 : i32
    return %arg0, %c0_i32 : i32, i32
  }
  func.func @transform_1(%arg0: i32) -> (i32, i32) {
    %c0_i32 = arith.constant 0 : i32
    %c0_i32_0 = arith.constant 0 : i32
    return %arg0, %c0_i32 : i32, i32
  }
  func.func @transform_2(%arg0: i32) -> (i32, i32) {
    %c0_i32 = arith.constant 0 : i32
    %c0_i32_0 = arith.constant 0 : i32
    %c0_i32_1 = arith.constant 0 : i32
    return %c0_i32, %c0_i32_0 : i32, i32
  }
  func.func @transform_3(%arg0: i32) -> (i32, i32) {
    %c0_i32 = arith.constant 0 : i32
    %c0_i32_0 = arith.constant 0 : i32
    %c0_i32_1 = arith.constant 0 : i32
    return %c0_i32, %c0_i32_0 : i32, i32
  }
  func.func @transform_4(%arg0: i32) -> (i32, i32) {
    %c0_i32 = arith.constant 0 : i32
    %c0_i32_0 = arith.constant 0 : i32
    %c0_i32_1 = arith.constant 0 : i32
    return %c0_i32, %c0_i32_0 : i32, i32
  }
  func.func @transform_5(%arg0: i32) -> (i32, i32) {
    %c0_i32 = arith.constant 0 : i32
    %c0_i32_0 = arith.constant 0 : i32
    return %arg0, %c0_i32 : i32, i32
  }
}

</mosaic_0001>

<llo_original>
// kernel: tpu_custom_call.1
$region0: #{tpu_custom_call.1}
  #allocation0 [shape = 'u32[]', space=smem, size = 0x4, offset = 0x4, fixed_abs, tag = 'smem constant byte address 0x4 - core index']
  #allocation1 [shape = 'u32[144,128]{1,0:T(1,128)}', space=vmem, size = 0x12000, scoped, tag = 'internal scratch']
  %s0 = inlined_call_operand.hbm [shape: f32[16,32], index: 0, kind: input, shape index: {}]
  %s1 = inlined_call_operand.hbm [shape: f32[16,32], index: 1, kind: input, shape index: {}]
  %s2 = inlined_call_operand.hbm [shape: f32[32,32], index: 2, kind: input, shape index: {}]
  %s3 = inlined_call_operand.hbm [shape: f32[32,32], index: 3, kind: input, shape index: {}]
  %s4 = inlined_call_operand.hbm [shape: f32[1,32], index: 4, kind: input, shape index: {}]
  %s5 = inlined_call_operand.hbm [shape: f32[16,32], index: 5, kind: output, shape index: {}]
  %s6 = sld [smem:[#allocation0]]
  $region73: #{tpu_custom_call.1} parent=0
    _
  %s8 = ssub.s32 1, %s6
  %s9 = scalar_select 0, %s8, %s6
  $region1: #{tpu_custom_call.1} parent=0
    #allocation2 [shape = 'u8[8192]{0}', space=vmem, size = 0x2000, scoped, tag = 'input window, operand 0']
    #allocation3 [shape = 's32[2]{0}', space=sflag, size = 0x8, scoped, tag = 'scoped memory for tpu_custom_call.1']
    #allocation4 [shape = 's32[2]{0}', space=sflag, size = 0x8, scoped, tag = 'scoped memory for tpu_custom_call.1']
    #allocation5 [shape = 'u8[8192]{0}', space=vmem, size = 0x2000, scoped, tag = 'input window, operand 1']
    #allocation6 [shape = 's32[2]{0}', space=sflag, size = 0x8, scoped, tag = 'scoped memory for tpu_custom_call.1']
    #allocation7 [shape = 'u8[16384]{0}', space=vmem, size = 0x4000, scoped, tag = 'input window, operand 2, single buffered']
    #allocation8 [shape = 'u8[16384]{0}', space=vmem, size = 0x4000, scoped, tag = 'input window, operand 3, single buffered']
    #allocation9 [shape = 's32[1]{0}', space=sflag, size = 0x4, scoped, tag = 'scoped memory for tpu_custom_call.1']
    #allocation10 [shape = 'u8[512]{0}', space=vmem, size = 0x400, scoped, tag = 'input window, operand 4, single buffered']
    #allocation11 [shape = 'u8[8192]{0}', space=vmem, size = 0x2000, scoped, tag = 'output window, operand 0']
    %10 = vsyncpa [#allocation3], 0
    %s11 = scalar_lea.sflag [#allocation3], 1
    %12 = vsyncpa %s11, 0
    %13 = vsyncpa [#allocation6], 0
    %s14 = scalar_lea.sflag [#allocation6], 1
    %15 = vsyncpa %s14, 0
    %16 = vsyncpa [#allocation9], 0
    %17 = vsyncpa [#allocation4], 0
    %s18 = scalar_lea.sflag [#allocation4], 1
    %19 = vsyncpa %s18, 0
    loop: start=0, step=1, limit=4
    $region2: #{tpu_custom_call.1} parent=1 // loop_pre_header
      _
    $region3: #{tpu_custom_call.1} parent=1 // loop_header
      %s21 = sphi 0, %s25
      %p22 = scmp.ge.s32.totalorder %s21, 4
      %s31 = sphi 0, %s33
      %s34 = sphi 0, %s31
      %s35 = sphi 0, %s34
      %s51 = sphi 0, %s35
      %s57 = sphi 0, %s59
      %s60 = sphi 0, %s57
      %s61 = sphi 0, %s60
      %s77 = sphi 0, %s61
      %s81 = sphi 0, %s81
      %s83 = sphi 0, %s81
      %s84 = sphi 0, %s83
      %s98 = sphi 0, %s84
      %s102 = sphi 0, %s102
      %s104 = sphi 0, %s102
      %s105 = sphi 0, %s104
      %s119 = sphi 0, %s105
      %s123 = sphi 0, %s123
      %s125 = sphi 0, %s123
      %s126 = sphi 0, %s125
      %s140 = sphi 0, %s126
      %s146 = sphi 0, %s148
      %s149 = sphi 0, %s146
      %s150 = sphi 0, %s149
      %s166 = sphi 0, %s150
    $region4: #{tpu_custom_call.1} parent=1 // loop_header_branch
      %24 = sbr.rel (%p22) target = $region8
    $region5: #{tpu_custom_call.1} parent=1 // loop_body
      %s26 = ssub.s32 %s21, 1
      %s27 = ssub.s32 %s21, 2
      %s28 = sadd.s32 %s21, 1
      %s29 = ssub.s32 %s21, %s28
      %p30 = scmp.eq.s32.totalorder %s29, 0
      %s32 = sadd.s32 %s31, 1
      %s33 = scalar_select %p30, %s31, %s32
      %p36 = pneg %p30
      %p37 = scmp.eq.s32.totalorder %s21, 1
      %p38 = por %p36, %p37
      %p39 = scmp.ne.s32.totalorder %s31, %s34
      %p40 = scmp.eq.s32.totalorder %s21, 0
      %p41 = por %p39, %p40
      %p42 = scmp.ne.s32.totalorder %s31, %s34
      %p43 = scmp.eq.s32.totalorder %s26, 1
      %p44 = por %p42, %p43
      %p45 = scmp.ne.s32.totalorder %s34, %s35
      %p46 = scmp.eq.s32.totalorder %s26, 0
      %p47 = por %p45, %p46
      %p48 = scmp.ne.s32.totalorder %s34, %s35
      %p49 = scmp.eq.s32.totalorder %s27, 1
      %p50 = por %p48, %p49
      %p52 = scmp.ne.s32.totalorder %s35, %s51
      %p53 = scmp.eq.s32.totalorder %s27, 0
      %p54 = por %p52, %p53
      %s55 = ssub.s32 %s21, %s28
      %p56 = scmp.eq.s32.totalorder %s55, 0
      %s58 = sadd.s32 %s57, 1
      %s59 = scalar_select %p56, %s57, %s58
      %p62 = pneg %p56
      %p63 = scmp.eq.s32.totalorder %s21, 1
      %p64 = por %p62, %p63
      %p65 = scmp.ne.s32.totalorder %s57, %s60
      %p66 = scmp.eq.s32.totalorder %s21, 0
      %p67 = por %p65, %p66
      %p68 = scmp.ne.s32.totalorder %s57, %s60
      %p69 = scmp.eq.s32.totalorder %s26, 1
      %p70 = por %p68, %p69
      %p71 = scmp.ne.s32.totalorder %s60, %s61
      %p72 = scmp.eq.s32.totalorder %s26, 0
      %p73 = por %p71, %p72
      %p74 = scmp.ne.s32.totalorder %s60, %s61
      %p75 = scmp.eq.s32.totalorder %s27, 1
      %p76 = por %p74, %p75
      %p78 = scmp.ne.s32.totalorder %s61, %s77
      %p79 = scmp.eq.s32.totalorder %s27, 0
      %p80 = por %p78, %p79
      %s82 = sadd.s32 %s81, 1
      %p85 = scmp.eq.s32.totalorder %s21, 1
      %p86 = scmp.ne.s32.totalorder %s81, %s83
      %p87 = scmp.eq.s32.totalorder %s21, 0
      %p88 = por %p86, %p87
      %p89 = scmp.ne.s32.totalorder %s81, %s83
      %p90 = scmp.eq.s32.totalorder %s26, 1
      %p91 = por %p89, %p90
      %p92 = scmp.ne.s32.totalorder %s83, %s84
      %p93 = scmp.eq.s32.totalorder %s26, 0
      %p94 = por %p92, %p93
      %p95 = scmp.ne.s32.totalorder %s83, %s84
      %p96 = scmp.eq.s32.totalorder %s27, 1
      %p97 = por %p95, %p96
      %p99 = scmp.ne.s32.totalorder %s84, %s98
      %p100 = scmp.eq.s32.totalorder %s27, 0
      %p101 = por %p99, %p100
      %s103 = sadd.s32 %s102, 1
      %p106 = scmp.eq.s32.totalorder %s21, 1
      %p107 = scmp.ne.s32.totalorder %s102, %s104
      %p108 = scmp.eq.s32.totalorder %s21, 0
      %p109 = por %p107, %p108
      %p110 = scmp.ne.s32.totalorder %s102, %s104
      %p111 = scmp.eq.s32.totalorder %s26, 1
      %p112 = por %p110, %p111
      %p113 = scmp.ne.s32.totalorder %s104, %s105
      %p114 = scmp.eq.s32.totalorder %s26, 0
      %p115 = por %p113, %p114
      %p116 = scmp.ne.s32.totalorder %s104, %s105
      %p117 = scmp.eq.s32.totalorder %s27, 1
      %p118 = por %p116, %p117
      %p120 = scmp.ne.s32.totalorder %s105, %s119
      %p121 = scmp.eq.s32.totalorder %s27, 0
      %p122 = por %p120, %p121
      %s124 = sadd.s32 %s123, 1
      %p127 = scmp.eq.s32.totalorder %s21, 1
      %p128 = scmp.ne.s32.totalorder %s123, %s125
      %p129 = scmp.eq.s32.totalorder %s21, 0
      %p130 = por %p128, %p129
      %p131 = scmp.ne.s32.totalorder %s123, %s125
      %p132 = scmp.eq.s32.totalorder %s26, 1
      %p133 = por %p131, %p132
      %p134 = scmp.ne.s32.totalorder %s125, %s126
      %p135 = scmp.eq.s32.totalorder %s26, 0
      %p136 = por %p134, %p135
      %p137 = scmp.ne.s32.totalorder %s125, %s126
      %p138 = scmp.eq.s32.totalorder %s27, 1
      %p139 = por %p137, %p138
      %p141 = scmp.ne.s32.totalorder %s126, %s140
      %p142 = scmp.eq.s32.totalorder %s27, 0
      %p143 = por %p141, %p142
      %s144 = ssub.s32 %s21, %s28
      %p145 = scmp.eq.s32.totalorder %s144, 0
      %s147 = sadd.s32 %s146, 1
      %s148 = scalar_select %p145, %s146, %s147
      %p151 = pneg %p145
      %p152 = scmp.eq.s32.totalorder %s21, 1
      %p153 = por %p151, %p152
      %p154 = scmp.ne.s32.totalorder %s146, %s149
      %p155 = scmp.eq.s32.totalorder %s21, 0
      %p156 = por %p154, %p155
      %p157 = scmp.ne.s32.totalorder %s146, %s149
      %p158 = scmp.eq.s32.totalorder %s26, 1
      %p159 = por %p157, %p158
      %p160 = scmp.ne.s32.totalorder %s149, %s150
      %p161 = scmp.eq.s32.totalorder %s26, 0
      %p162 = por %p160, %p161
      %p163 = scmp.ne.s32.totalorder %s149, %s150
      %p164 = scmp.eq.s32.totalorder %s27, 1
      %p165 = por %p163, %p164
      %p167 = scmp.ne.s32.totalorder %s150, %s166
      %p168 = scmp.eq.s32.totalorder %s27, 0
      %p169 = por %p167, %p168
      %p170 = scmp.le.s32.totalorder 1, %s21
      %p171 = scmp.lt.s32.totalorder %s21, 3
      %p172 = pnand %p170, %p171
      %p173 = pneg %p172
      // Predicated region
      $region9: #{tpu_custom_call.1} parent=5 // pred_check
        _
      $region10: #{tpu_custom_call.1} parent=5 // pred_check_branch
        %175 = sbr.rel (%p172) target = $region12
      $region11: #{tpu_custom_call.1} parent=5 // pred_region
        %s176 = ssub.s32 %s21, 1
        // Predicated region
        $region13: #{tpu_custom_call.1} parent=11 // pred_check
          %p177 = pneg %p94
        $region14: #{tpu_custom_call.1} parent=11 // pred_check_branch
          %179 = sbr.rel (%p177) target = $region16
        $region15: #{tpu_custom_call.1} parent=11 // pred_region
          %s181 = ssub.s32 512, 512
          %182 = vsyncadd [#allocation6], %s181
          %s183 = sshll.u32 [#allocation7], 4
          %s184 = int_to_ptr.vmem [resolvable:$true] %s183
          %189 = dma.hbm_to_vmem [thread:$0]  %s2, 512, %s184, [#allocation6], 128, 128, 8
        $region16: #{tpu_custom_call.1} parent=11 // pred_fallthru
          _
        // Predicated region
        $region17: #{tpu_custom_call.1} parent=11 // pred_check
          %p190 = pneg %p115
        $region18: #{tpu_custom_call.1} parent=11 // pred_check_branch
          %192 = sbr.rel (%p190) target = $region20
        $region19: #{tpu_custom_call.1} parent=11 // pred_region
          %s194 = ssub.s32 512, 512
          %195 = vsyncadd [#allocation9], %s194
          %s196 = sshll.u32 [#allocation8], 4
          %s197 = int_to_ptr.vmem [resolvable:$true] %s196
          %202 = dma.hbm_to_vmem [thread:$0]  %s3, 512, %s197, [#allocation9], 128, 128, 8
        $region20: #{tpu_custom_call.1} parent=11 // pred_fallthru
          _
        // Predicated region
        $region21: #{tpu_custom_call.1} parent=11 // pred_check
          %p203 = pneg %p136
        $region22: #{tpu_custom_call.1} parent=11 // pred_check_branch
          %205 = sbr.rel (%p203) target = $region24
        $region23: #{tpu_custom_call.1} parent=11 // pred_region
          %s207 = ssub.s32 16, 16
          %208 = vsyncadd [#allocation9], %s207
          %s210 = sshll.u32 [#allocation10], 4
          %s211 = int_to_ptr.vmem [resolvable:$true] %s210
          %213 = dma.hbm_to_vmem [thread:$0]  %s4, 16, %s211, [#allocation9]
        $region24: #{tpu_custom_call.1} parent=11 // pred_fallthru
          _
      $region12: #{tpu_custom_call.1} parent=5 // pred_fallthru
        _
      %p214 = scmp.lt.s32.totalorder %s21, 2
      // Predicated region
      $region25: #{tpu_custom_call.1} parent=5 // pred_check
        %p215 = pneg %p214
      $region26: #{tpu_custom_call.1} parent=5 // pred_check_branch
        %217 = sbr.rel (%p215) target = $region28
      $region27: #{tpu_custom_call.1} parent=5 // pred_region
        // Predicated region
        $region29: #{tpu_custom_call.1} parent=27 // pred_check
          %p218 = pneg %p41
        $region30: #{tpu_custom_call.1} parent=27 // pred_check_branch
          %220 = sbr.rel (%p218) target = $region32
        $region31: #{tpu_custom_call.1} parent=27 // pred_region
          %s221 = sand.u32 %s31, 1
          %s222 = scalar_lea.sflag [#allocation3], %s221
          %s223 = sand.u32 %s31, 1
          %s224 = smul.addr %s223, 8
          %s225 = scalar_lea.vmem [#allocation2], %s224
          %s227 = ssub.s32 128, 128
          %228 = vsyncadd %s222, %s227
          %s229 = smul.addr %s21, 128
          %s230 = scalar_lea.hbm %s0, %s229
          %s232 = sshll.u32 %s225, 4
          %s233 = int_to_ptr.vmem [resolvable:$true] %s232
          %235 = dma.hbm_to_vmem [thread:$0]  %s230, 128, %s233, %s222
        $region32: #{tpu_custom_call.1} parent=27 // pred_fallthru
          _
        // Predicated region
        $region33: #{tpu_custom_call.1} parent=27 // pred_check
          %p236 = pneg %p67
        $region34: #{tpu_custom_call.1} parent=27 // pred_check_branch
          %238 = sbr.rel (%p236) target = $region36
        $region35: #{tpu_custom_call.1} parent=27 // pred_region
          %s239 = sand.u32 %s21, 1
          %s240 = scalar_lea.sflag [#allocation6], %s239
          %s241 = sand.u32 %s57, 1
          %s242 = smul.addr %s241, 8
          %s243 = scalar_lea.vmem [#allocation5], %s242
          %s245 = ssub.s32 128, 128
          %246 = vsyncadd %s240, %s245
          %s247 = smul.addr %s21, 128
          %s248 = scalar_lea.hbm %s1, %s247
          %s250 = sshll.u32 %s243, 4
          %s251 = int_to_ptr.vmem [resolvable:$true] %s250
          %253 = dma.hbm_to_vmem [thread:$0]  %s248, 128, %s251, %s240
        $region36: #{tpu_custom_call.1} parent=27 // pred_fallthru
          _
      $region28: #{tpu_custom_call.1} parent=5 // pred_fallthru
        _
      %p254 = scmp.le.s32.totalorder 1, %s21
      %p255 = scmp.lt.s32.totalorder %s21, 3
      %p256 = pnand %p254, %p255
      %p257 = pneg %p256
      // Predicated region
      $region37: #{tpu_custom_call.1} parent=5 // pred_check
        _
      $region38: #{tpu_custom_call.1} parent=5 // pred_check_branch
        %259 = sbr.rel (%p256) target = $region40
      $region39: #{tpu_custom_call.1} parent=5 // pred_region
        %s260 = ssub.s32 %s21, 1
        %s261 = sand.u32 %s34, 1
        %s262 = scalar_lea.sflag [#allocation3], %s261
        %s263 = sand.u32 %s34, 1
        %s264 = smul.addr %s263, 8
        %s265 = scalar_lea.vmem [#allocation2], %s264
        // Predicated region
        $region41: #{tpu_custom_call.1} parent=39 // pred_check
          %p266 = pneg %p47
        $region42: #{tpu_custom_call.1} parent=39 // pred_check_branch
          %268 = sbr.rel (%p266) target = $region44
        $region43: #{tpu_custom_call.1} parent=39 // pred_region
          %269 = dma.done %s262, 128
        $region44: #{tpu_custom_call.1} parent=39 // pred_fallthru
          _
        %s270 = sand.u32 %s26, 1
        %s271 = scalar_lea.sflag [#allocation6], %s270
        %s272 = sand.u32 %s60, 1
        %s273 = smul.addr %s272, 8
        %s274 = scalar_lea.vmem [#allocation5], %s273
        // Predicated region
        $region45: #{tpu_custom_call.1} parent=39 // pred_check
          %p275 = pneg %p73
        $region46: #{tpu_custom_call.1} parent=39 // pred_check_branch
          %277 = sbr.rel (%p275) target = $region48
        $region47: #{tpu_custom_call.1} parent=39 // pred_region
          %278 = dma.done %s271, 128
        $region48: #{tpu_custom_call.1} parent=39 // pred_fallthru
          _
        // Predicated region
        $region49: #{tpu_custom_call.1} parent=39 // pred_check
          %p279 = pneg %p94
        $region50: #{tpu_custom_call.1} parent=39 // pred_check_branch
          %281 = sbr.rel (%p279) target = $region52
        $region51: #{tpu_custom_call.1} parent=39 // pred_region
          %282 = dma.done [#allocation6], 512
        $region52: #{tpu_custom_call.1} parent=39 // pred_fallthru
          _
        // Predicated region
        $region53: #{tpu_custom_call.1} parent=39 // pred_check
          %p283 = pneg %p115
        $region54: #{tpu_custom_call.1} parent=39 // pred_check_branch
          %285 = sbr.rel (%p283) target = $region56
        $region55: #{tpu_custom_call.1} parent=39 // pred_region
          %286 = dma.done [#allocation9], 512
        $region56: #{tpu_custom_call.1} parent=39 // pred_fallthru
          _
        // Predicated region
        $region57: #{tpu_custom_call.1} parent=39 // pred_check
          %p287 = pneg %p136
        $region58: #{tpu_custom_call.1} parent=39 // pred_check_branch
          %289 = sbr.rel (%p287) target = $region60
        $region59: #{tpu_custom_call.1} parent=39 // pred_region
          %290 = dma.done [#allocation9], 16
        $region60: #{tpu_custom_call.1} parent=39 // pred_fallthru
          _
        %s291 = sand.u32 %s34, 1
        %s292 = scalar_lea.sflag [#allocation3], %s291
        %s293 = sand.u32 %s34, 1
        %s294 = smul.addr %s293, 8
        %s295 = scalar_lea.vmem [#allocation2], %s294
        %p296 = pneg %p47
        %p297 = pneg %p44
        %s298 = sand.u32 %s26, 1
        %s299 = scalar_lea.sflag [#allocation6], %s298
        %s300 = sand.u32 %s60, 1
        %s301 = smul.addr %s300, 8
        %s302 = scalar_lea.vmem [#allocation5], %s301
        %p303 = pneg %p73
        %p304 = pneg %p70
        %p305 = pneg %p94
        %p306 = pneg %p91
        %p307 = pneg %p115
        %p308 = pneg %p112
        %p309 = pneg %p136
        %p310 = pneg %p133
        %p311 = pneg %p162
        %p312 = pneg %p159
        %s313 = sand.u32 %s149, 1
        %s314 = scalar_lea.sflag [#allocation4], %s313
        %s315 = sand.u32 %s149, 1
        %s316 = smul.addr %s315, 8
        %s317 = scalar_lea.vmem [#allocation11], %s316
        %v318 = vld [vmem:[%s265] sm:$0xff]
        %v319 = vld [vmem:[#allocation7] sm:$0xff]
        %v320 = vld [vmem:[#allocation7 + $0x8] sm:$0xff]
        %v321 = vld [vmem:[#allocation7 + $0x10] sm:$0xff]
        %v322 = vld [vmem:[#allocation7 + $0x18] sm:$0xff]
        %v323 = vld [vmem:[%s274] sm:$0xff]
        %v324 = vld [vmem:[#allocation8] sm:$0xff]
        %v325 = vld [vmem:[#allocation8 + $0x8] sm:$0xff]
        %v326 = vld [vmem:[#allocation8 + $0x10] sm:$0xff]
        %v327 = vld [vmem:[#allocation8 + $0x18] sm:$0xff]
        %vm328 = vcmask 261120
        %v330 = vsel %vm328, %v323, 0
        %332 = vmatprep.subr.mxu0 0.0
        %333 = vmatpush1.msra.mxu0 %v324
        %334 = vmatprep.subr.mxu0 0.0
        %335 = vmatpush1.msra.mxu0 %v325
        %336 = vmatprep.subr.mxu0 0.0
        %337 = vmatpush1.msra.mxu0 %v326
        %338 = vmatprep.subr.mxu0 0.0
        %339 = vmatpush1.msra.mxu0 %v327
        %340 = vmatprep.subr.mxu0 0.0
        %341 = vmatpush1.msra.mxu0 0.0
        %342 = vmatprep.subr.mxu0 0.0
        %343 = vmatpush1.msra.mxu0 0.0
        %344 = vmatprep.subr.mxu0 0.0
        %345 = vmatpush1.msra.mxu0 0.0
        %346 = vmatprep.subr.mxu0 0.0
        %347 = vmatpush1.msra.mxu0 0.0
        %348 = vmatprep.subr.mxu0 0.0
        %349 = vmatpush1.msra.mxu0 0.0
        %350 = vmatprep.subr.mxu0 0.0
        %351 = vmatpush1.msra.mxu0 0.0
        %352 = vmatprep.subr.mxu0 0.0
        %353 = vmatpush1.msra.mxu0 0.0
        %354 = vmatprep.subr.mxu0 0.0
        %355 = vmatpush1.msra.mxu0 0.0
        %356 = vmatprep.subr.mxu0 0.0
        %357 = vmatpush1.msra.mxu0 0.0
        %358 = vmatprep.subr.mxu0 0.0
        %359 = vmatpush1.msra.mxu0 0.0
        %360 = vmatprep.subr.mxu0 0.0
        %361 = vmatpush1.msra.mxu0 0.0
        %362 = vmatprep.subr.mxu0 0.0
        %363 = vmatpush1.msra.mxu0 0.0
        %364 = vmatprep.subr.mxu0 0.0
        %365 = vmatpush1.msra.mxu0 0.0
        %366 = vmatprep.subr.mxu0 0.0
        %367 = vmatpush1.msra.mxu0 0.0
        %368 = vmatprep.subr.mxu0 0.0
        %369 = vmatpush1.msra.mxu0 0.0
        %370 = vmatprep.subr.mxu0 0.0
        %371 = vmatpush1.msra.mxu0 0.0
        %372 = vmatprep.subr.mxu0 0.0
        %373 = vmatpush1.msra.mxu0 0.0
        %374 = vmatprep.subr.mxu0 0.0
        %375 = vmatpush1.msra.mxu0 0.0
        %376 = vmatprep.subr.mxu0 0.0
        %377 = vmatpush1.msra.mxu0 0.0
        %378 = vmatprep.subr.mxu0 0.0
        %379 = vmatpush1.msra.mxu0 0.0
        %380 = vmatprep.subr.mxu0 0.0
        %381 = vmatpush1.msra.mxu0 0.0
        %382 = vmatprep.subr.mxu0 0.0
        %383 = vmatpush1.msra.mxu0 0.0
        %384 = vmatprep.subr.mxu0 0.0
        %385 = vmatpush1.msra.mxu0 0.0
        %386 = vmatprep.subr.mxu0 0.0
        %387 = vmatpush1.msra.mxu0 0.0
        %388 = vmatprep.subr.mxu0 0.0
        %389 = vmatpush1.msra.mxu0 0.0
        %390 = vmatprep.subr.mxu0 0.0
        %391 = vmatpush1.msra.mxu0 0.0
        %392 = vmatprep.subr.mxu0 0.0
        %393 = vmatpush1.msra.mxu0 0.0
        %394 = vmatprep.subr.mxu0 0.0
        %395 = vmatpush1.msra.mxu0 0.0
        %396 = vmatprep.mubr.f32.mxu0 0.0
        %397 = vmatmul.mubr.f32.gmra.mrb[0].mxu0 %v330
        %v398 = vpop.f32.mrb[0].mxu0
        %v399 = vadd.f32 0.0, %v398
        %v400 = vpop.f32.mrb[0].mxu0
        %401 = vdwg.mxu0
        %v403 = vsel %vm328, %v318, 0
        %405 = vmatprep.subr.mxu0 0.0
        %406 = vmatpush1.msra.mxu0 %v319
        %407 = vmatprep.subr.mxu0 0.0
        %408 = vmatpush1.msra.mxu0 %v320
        %409 = vmatprep.subr.mxu0 0.0
        %410 = vmatpush1.msra.mxu0 %v321
        %411 = vmatprep.subr.mxu0 0.0
        %412 = vmatpush1.msra.mxu0 %v322
        %413 = vmatprep.subr.mxu0 0.0
        %414 = vmatpush1.msra.mxu0 0.0
        %415 = vmatprep.subr.mxu0 0.0
        %416 = vmatpush1.msra.mxu0 0.0
        %417 = vmatprep.subr.mxu0 0.0
        %418 = vmatpush1.msra.mxu0 0.0
        %419 = vmatprep.subr.mxu0 0.0
        %420 = vmatpush1.msra.mxu0 0.0
        %421 = vmatprep.subr.mxu0 0.0
        %422 = vmatpush1.msra.mxu0 0.0
        %423 = vmatprep.subr.mxu0 0.0
        %424 = vmatpush1.msra.mxu0 0.0
        %425 = vmatprep.subr.mxu0 0.0
        %426 = vmatpush1.msra.mxu0 0.0
        %427 = vmatprep.subr.mxu0 0.0
        %428 = vmatpush1.msra.mxu0 0.0
        %429 = vmatprep.subr.mxu0 0.0
        %430 = vmatpush1.msra.mxu0 0.0
        %431 = vmatprep.subr.mxu0 0.0
        %432 = vmatpush1.msra.mxu0 0.0
        %433 = vmatprep.subr.mxu0 0.0
        %434 = vmatpush1.msra.mxu0 0.0
        %435 = vmatprep.subr.mxu0 0.0
        %436 = vmatpush1.msra.mxu0 0.0
        %437 = vmatprep.subr.mxu0 0.0
        %438 = vmatpush1.msra.mxu0 0.0
        %439 = vmatprep.subr.mxu0 0.0
        %440 = vmatpush1.msra.mxu0 0.0
        %441 = vmatprep.subr.mxu0 0.0
        %442 = vmatpush1.msra.mxu0 0.0
        %443 = vmatprep.subr.mxu0 0.0
        %444 = vmatpush1.msra.mxu0 0.0
        %445 = vmatprep.subr.mxu0 0.0
        %446 = vmatpush1.msra.mxu0 0.0
        %447 = vmatprep.subr.mxu0 0.0
        %448 = vmatpush1.msra.mxu0 0.0
        %449 = vmatprep.subr.mxu0 0.0
        %450 = vmatpush1.msra.mxu0 0.0
        %451 = vmatprep.subr.mxu0 0.0
        %452 = vmatpush1.msra.mxu0 0.0
        %453 = vmatprep.subr.mxu0 0.0
        %454 = vmatpush1.msra.mxu0 0.0
        %455 = vmatprep.subr.mxu0 0.0
        %456 = vmatpush1.msra.mxu0 0.0
        %457 = vmatprep.subr.mxu0 0.0
        %458 = vmatpush1.msra.mxu0 0.0
        %459 = vmatprep.subr.mxu0 0.0
        %460 = vmatpush1.msra.mxu0 0.0
        %461 = vmatprep.subr.mxu0 0.0
        %462 = vmatpush1.msra.mxu0 0.0
        %463 = vmatprep.subr.mxu0 0.0
        %464 = vmatpush1.msra.mxu0 0.0
        %465 = vmatprep.subr.mxu0 0.0
        %466 = vmatpush1.msra.mxu0 0.0
        %467 = vmatprep.subr.mxu0 0.0
        %468 = vmatpush1.msra.mxu0 0.0
        %469 = vmatprep.mubr.f32.mxu0 0.0
        %470 = vmatmul.mubr.f32.gmra.mrb[0].mxu0 %v403
        %v471 = vpop.f32.mrb[0].mxu0
        %v472 = vadd.f32 %v399, %v471
        %v473 = vpop.f32.mrb[0].mxu0
        %474 = vdwg.mxu0
        %v475 = vld [vmem:[#allocation10] sm:$0x1]
        %v477 = vlaneseq
        %v478 = vshrl.u32 %v477, 7
        %v479 = vsub.s32 0, %v478
        %v480 = vrot.slane %v475, %v479
        %v482 = vadd.f32 %v472, %v480
        %v483 = vmul.f32 %v482, 0.5
        %v484 = vtanh.pop %v483
        %v485 = vadd.f32 %v484, 1.0
        %v486 = vmul.f32 %v485, 0.5
        %v487 = vmul.f32 %v486, %v323
        %488 = vst.msk [vmem:[%s317] sm:$0xff] %vm328, %v487
        %s489 = sand.u32 %s149, 1
        %s490 = scalar_lea.sflag [#allocation4], %s489
        %s491 = sand.u32 %s149, 1
        %s492 = smul.addr %s491, 8
        %s493 = scalar_lea.vmem [#allocation11], %s492
        // Predicated region
        $region61: #{tpu_custom_call.1} parent=39 // pred_check
          %p494 = pneg %p159
        $region62: #{tpu_custom_call.1} parent=39 // pred_check_branch
          %496 = sbr.rel (%p494) target = $region64
        $region63: #{tpu_custom_call.1} parent=39 // pred_region
          %s498 = ssub.s32 128, 128
          %499 = vsyncadd %s490, %s498
          %s500 = smul.addr %s26, 128
          %s501 = scalar_lea.hbm %s5, %s500
          %s503 = sshll.u32 %s493, 4
          %s504 = int_to_ptr.vmem [resolvable:$true] %s503
          %506 = dma.vmem_to_hbm [thread:$0]  %s504, 128, %s501, %s490
        $region64: #{tpu_custom_call.1} parent=39 // pred_fallthru
          _
      $region40: #{tpu_custom_call.1} parent=5 // pred_fallthru
        _
      %p507 = scmp.le.s32.totalorder 2, %s21
      // Predicated region
      $region65: #{tpu_custom_call.1} parent=5 // pred_check
        %p508 = pneg %p507
      $region66: #{tpu_custom_call.1} parent=5 // pred_check_branch
        %510 = sbr.rel (%p508) target = $region68
      $region67: #{tpu_custom_call.1} parent=5 // pred_region
        %s511 = ssub.s32 %s21, 2
        // Predicated region
        $region69: #{tpu_custom_call.1} parent=67 // pred_check
          %p512 = pneg %p165
        $region70: #{tpu_custom_call.1} parent=67 // pred_check_branch
          %514 = sbr.rel (%p512) target = $region72
        $region71: #{tpu_custom_call.1} parent=67 // pred_region
          %s515 = sand.u32 %s150, 1
          %s516 = scalar_lea.sflag [#allocation4], %s515
          %s517 = sand.u32 %s150, 1
          %s518 = smul.addr %s517, 8
          %s519 = scalar_lea.vmem [#allocation11], %s518
          %520 = dma.done %s516, 128
        $region72: #{tpu_custom_call.1} parent=67 // pred_fallthru
          _
      $region68: #{tpu_custom_call.1} parent=5 // pred_fallthru
        _
    $region6: #{tpu_custom_call.1} parent=1 // loop_footer
      %s25 = sadd.s32 1, %s21
    $region7: #{tpu_custom_call.1} parent=1 // loop_footer_branch
      %20 = sbr.rel target = $region3
    $region8: #{tpu_custom_call.1} parent=1 // loop_exit
      _
    %521 = vsyncpa [#allocation3], 1
    %s522 = scalar_lea.sflag [#allocation3], 1
    %523 = vsyncpa %s522, 1
    %524 = vsyncpa [#allocation6], 1
    %s525 = scalar_lea.sflag [#allocation6], 1
    %526 = vsyncpa %s525, 1
    %527 = vsyncpa [#allocation9], 1
    %528 = vsyncpa [#allocation4], 1
    %s529 = scalar_lea.sflag [#allocation4], 1
    %530 = vsyncpa %s529, 1

</llo_original>
